<compile_context>
chip_gen: v7x
topology: tpu7x:2x2x1
jax: 0.10.0
libtpu: 0.0.40
codegen_flags: <defaults>
</compile_context>

<pallas_src>
import jax
import jax.numpy as jnp
from jax.experimental import pallas as pl
from jax.experimental.pallas import tpu as pltpu

_LANE = 128
# ~8 MiB per tile: 2 buffers x (in + out) x 8 MiB = 32 MiB of VMEM.
_TARGET_TILE_BYTES = 8 * 1024 * 1024
# Below this, a plain XLA fusion beats the fixed pallas_call overhead.
_SMALL_INPUT_BYTES = 256 * 1024
# 32 MiB of double-buffered tiles + headroom; within v7x's 64 MiB physical.
_VMEM_LIMIT_BYTES = 48 * 1024 * 1024


def _relu_kernel(x_ref, o_ref):
    # Elementwise ReLU on the whole VMEM tile (VPU path). Nothing more to
    # micro-optimize here: 1 vld + 1 vmax + 1 vst per vreg leaves huge slack
    # vs HBM bandwidth; adjacent elementwise ops could be fused here for free.
    o_ref[...] = jnp.maximum(x_ref[...], jnp.zeros((), x_ref.dtype))


def _sublane_granule(dtype):
    # Sub-32-bit dtypes pack along sublanes: 8 rows for 32-bit, 16 for 16-bit,
    # 32 for 8-bit, so tiles stay on packed-vreg boundaries.
    itemsize = jnp.dtype(dtype).itemsize
    return max(8, 32 // itemsize)


def cx_forward(x, *, donate_input=False):
    """Forward pass of Cx: ReLU(x)."""
    orig_shape = x.shape
    dtype = x.dtype
    itemsize = jnp.dtype(dtype).itemsize
    n_elems = x.size

    if n_elems == 0:
        return x

    # Fast path 1: tiny inputs — custom-call + pipeline setup overhead
    # dominates, a fused XLA max is strictly faster on every generation.
    # Fast path 2: lane-misaligned inputs — keeping these out of the kernel
    # avoids the full pad + crop HBM passes that a (rows, 128) slab would
    # need; plain XLA elementwise is already at HBM roofline for them.
    if (n_elems * itemsize < _SMALL_INPUT_BYTES) or (n_elems % _LANE != 0):
        return jnp.maximum(x, jnp.zeros((), dtype))

    rows = n_elems // _LANE
    # Contiguous flatten + reshape: a view in compiled XLA, no HBM pass.
    x2d = jnp.ravel(x).reshape(rows, _LANE)

    sub = _sublane_granule(dtype)
    # Dtype-aware ~8 MiB tiles (multiple of the sublane granule).
    target_rows = max(sub, (_TARGET_TILE_BYTES // (_LANE * itemsize)) // sub * sub)

    if rows <= sub:
        # Full-extent block (allowed even when not a multiple of 8).
        block_rows = rows
    else:
        # Prefer >= 2 grid steps so the "parallel" axis can shard across
        # v7x's 2 TensorCores even when the whole slab fits in one tile.
        half_rows = (rows + 1) // 2
        half_rows = ((half_rows + sub - 1) // sub) * sub
        block_rows = min(target_rows, half_rows)
    grid = (pl.cdiv(rows, block_rows),)

    # Advisory hint: this call is pure HBM streaming (1 read + 1 write pass).
    cost = pl.CostEstimate(
        flops=n_elems,
        transcendentals=0,
        bytes_accessed=2 * n_elems * itemsize,
    )

    # ReLU is elementwise in-place-safe; donating drops the separate output
    # HBM allocation (footprint/latency win). Opt-in because it consumes the
    # caller's buffer.
    io_aliases = {0: 0} if donate_input else {}

    out2d = pl.pallas_call(
        _relu_kernel,
        out_shape=jax.ShapeDtypeStruct((rows, _LANE), dtype),
        grid=grid,
        # Partial last block along rows is edge-masked by Pallas — no padding.
        in_specs=[pl.BlockSpec((block_rows, _LANE), lambda i: (i, 0))],
        out_specs=pl.BlockSpec((block_rows, _LANE), lambda i: (i, 0)),
        compiler_params=pltpu.CompilerParams(
            dimension_semantics=("parallel",),
            vmem_limit_bytes=_VMEM_LIMIT_BYTES,
        ),
        cost_estimate=cost,
        input_output_aliases=io_aliases,
    )(x2d)

    return out2d.reshape(orig_shape)


if __name__ == "__main__":
    key = jax.random.PRNGKey(0)
    k1, k2, k3 = jax.random.split(key, 3)

    # 1) Small NCHW input consistent with the module (takes the fast path).
    x_small = jax.random.normal(k1, (2, 4, 16, 16), dtype=jnp.float32)
    out_small = jax.block_until_ready(cx_forward(x_small))
    ref_small = jnp.maximum(x_small, 0.0)
    assert out_small.shape == x_small.shape and out_small.dtype == x_small.dtype
    assert jnp.allclose(out_small, ref_small), "ReLU fast-path mismatch"

    # 2) Larger NCHW input that exercises the Pallas kernel (>= 2 grid steps).
    x_big = jax.random.normal(k2, (8, 4, 64, 64), dtype=jnp.float32)
    out_big = jax.block_until_ready(cx_forward(x_big))
    ref_big = jnp.maximum(x_big, 0.0)
    assert out_big.shape == x_big.shape and out_big.dtype == x_big.dtype
    assert jnp.allclose(out_big, ref_big), "ReLU kernel mismatch (aligned rows)"

    # 3) Row count not a multiple of the block -> partial last block masking.
    x_odd = jax.random.normal(k3, (2, 3, 111, 128), dtype=jnp.float32)
    out_odd = jax.block_until_ready(cx_forward(x_odd))
    ref_odd = jnp.maximum(x_odd, 0.0)
    assert out_odd.shape == x_odd.shape and out_odd.dtype == x_odd.dtype
    assert jnp.allclose(out_odd, ref_odd), "ReLU kernel mismatch (partial block)"

    print("KERNEL_OK")
</pallas_src>

<mosaic_0001>
module attributes {stable_mosaic.version = 11 : i64} {
  func.func @_relu_kernel(%arg0: i32, %arg1: memref<512x128xf32, #tpu.memory_space<vmem>>, %arg2: memref<512x128xf32, #tpu.memory_space<vmem>>) attributes {dimension_semantics = [#tpu.dimension_semantics<parallel>], iteration_bounds = array<i64: 2>, scalar_prefetch = 0 : i64, scratch_operands = 0 : i64, tpu.core_type = #tpu.core_type<tc>, window_params = [{transform_indices = @transform_0, window_bounds = array<i64: 512, 128>}, {transform_indices = @transform_1, window_bounds = array<i64: 512, 128>}]} {
    %c0 = arith.constant 0 : index
    %c0_0 = arith.constant 0 : index
    %0 = vector.load %arg1[%c0, %c0_0] : memref<512x128xf32, #tpu.memory_space<vmem>>, vector<512x128xf32>
    %cst = arith.constant 0.000000e+00 : f32
    %1 = vector.broadcast %cst : f32 to vector<512x128xf32>
    %2 = arith.maximumf %0, %1 : vector<512x128xf32>
    %c0_1 = arith.constant 0 : index
    %c0_2 = arith.constant 0 : index
    %3 = vector.load %arg2[%c0_1, %c0_2] : memref<512x128xf32, #tpu.memory_space<vmem>>, vector<512x128xf32>
    tpu.vector_store %arg2[%c0_1, %c0_2], %2 {strides = array<i32>} : memref<512x128xf32, #tpu.memory_space<vmem>>, vector<512x128xf32>,
    return
  }
  func.func @transform_0(%arg0: i32) -> (i32, i32) {
    %c0_i32 = arith.constant 0 : i32
    %c0_i32_0 = arith.constant 0 : i32
    return %arg0, %c0_i32 : i32, i32
  }
  func.func @transform_1(%arg0: i32) -> (i32, i32) {
    %c0_i32 = arith.constant 0 : i32
    %c0_i32_0 = arith.constant 0 : i32
    return %arg0, %c0_i32 : i32, i32
  }
}

</mosaic_0001>

<llo_original>
// kernel: tpu_custom_call.1
$region0: #{tpu_custom_call.1}
  #allocation0 [shape = 'u32[]', space=smem, size = 0x4, offset = 0x4, fixed_abs, tag = 'smem constant byte address 0x4 - core index']
  #allocation1 [shape = 'u32[144,128]{1,0:T(1,128)}', space=vmem, size = 0x12000, scoped, tag = 'internal scratch']
  %s0 = inlined_call_operand.hbm [shape: f32[1024,128], index: 0, kind: input, shape index: {}]
  %s1 = inlined_call_operand.hbm [shape: f32[1024,128], index: 1, kind: output, shape index: {}]
  %s2 = sld [smem:[#allocation0]]
  $region41: #{tpu_custom_call.1} parent=0
    _
  %s4 = ssub.s32 1, %s2
  %s5 = scalar_select 0, %s4, %s2
  $region1: #{tpu_custom_call.1} parent=0
    #allocation2 [shape = 'u8[524288]{0}', space=vmem, size = 0x80000, scoped, tag = 'input window, operand 0']
    #allocation3 [shape = 's32[2]{0}', space=sflag, size = 0x8, scoped, tag = 'scoped memory for tpu_custom_call.1']
    #allocation4 [shape = 's32[2]{0}', space=sflag, size = 0x8, scoped, tag = 'scoped memory for tpu_custom_call.1']
    #allocation5 [shape = 'u8[524288]{0}', space=vmem, size = 0x80000, scoped, tag = 'output window, operand 0']
    %6 = vsyncpa [#allocation3], 0
    %s7 = scalar_lea.sflag [#allocation3], 1
    %8 = vsyncpa %s7, 0
    %9 = vsyncpa [#allocation4], 0
    %s10 = scalar_lea.sflag [#allocation4], 1
    %11 = vsyncpa %s10, 0
    loop: start=0, step=1, limit=4
    $region2: #{tpu_custom_call.1} parent=1 // loop_pre_header
      _
    $region3: #{tpu_custom_call.1} parent=1 // loop_header
      %s13 = sphi 0, %s17
      %p14 = scmp.ge.s32.totalorder %s13, 4
      %s23 = sphi 0, %s25
      %s26 = sphi 0, %s23
      %s27 = sphi 0, %s26
      %s43 = sphi 0, %s27
      %s49 = sphi 0, %s51
      %s52 = sphi 0, %s49
      %s53 = sphi 0, %s52
      %s69 = sphi 0, %s53
    $region4: #{tpu_custom_call.1} parent=1 // loop_header_branch
      %16 = sbr.rel (%p14) target = $region8
    $region5: #{tpu_custom_call.1} parent=1 // loop_body
      %s18 = ssub.s32 %s13, 1
      %s19 = ssub.s32 %s13, 2
      %s20 = sadd.s32 %s13, 1
      %s21 = ssub.s32 %s13, %s20
      %p22 = scmp.eq.s32.totalorder %s21, 0
      %s24 = sadd.s32 %s23, 1
      %s25 = scalar_select %p22, %s23, %s24
      %p28 = pneg %p22
      %p29 = scmp.eq.s32.totalorder %s13, 1
      %p30 = por %p28, %p29
      %p31 = scmp.ne.s32.totalorder %s23, %s26
      %p32 = scmp.eq.s32.totalorder %s13, 0
      %p33 = por %p31, %p32
      %p34 = scmp.ne.s32.totalorder %s23, %s26
      %p35 = scmp.eq.s32.totalorder %s18, 1
      %p36 = por %p34, %p35
      %p37 = scmp.ne.s32.totalorder %s26, %s27
      %p38 = scmp.eq.s32.totalorder %s18, 0
      %p39 = por %p37, %p38
      %p40 = scmp.ne.s32.totalorder %s26, %s27
      %p41 = scmp.eq.s32.totalorder %s19, 1
      %p42 = por %p40, %p41
      %p44 = scmp.ne.s32.totalorder %s27, %s43
      %p45 = scmp.eq.s32.totalorder %s19, 0
      %p46 = por %p44, %p45
      %s47 = ssub.s32 %s13, %s20
      %p48 = scmp.eq.s32.totalorder %s47, 0
      %s50 = sadd.s32 %s49, 1
      %s51 = scalar_select %p48, %s49, %s50
      %p54 = pneg %p48
      %p55 = scmp.eq.s32.totalorder %s13, 1
      %p56 = por %p54, %p55
      %p57 = scmp.ne.s32.totalorder %s49, %s52
      %p58 = scmp.eq.s32.totalorder %s13, 0
      %p59 = por %p57, %p58
      %p60 = scmp.ne.s32.totalorder %s49, %s52
      %p61 = scmp.eq.s32.totalorder %s18, 1
      %p62 = por %p60, %p61
      %p63 = scmp.ne.s32.totalorder %s52, %s53
      %p64 = scmp.eq.s32.totalorder %s18, 0
      %p65 = por %p63, %p64
      %p66 = scmp.ne.s32.totalorder %s52, %s53
      %p67 = scmp.eq.s32.totalorder %s19, 1
      %p68 = por %p66, %p67
      %p70 = scmp.ne.s32.totalorder %s53, %s69
      %p71 = scmp.eq.s32.totalorder %s19, 0
      %p72 = por %p70, %p71
      %p73 = scmp.le.s32.totalorder 1, %s13
      %p74 = scmp.lt.s32.totalorder %s13, 3
      %p75 = pnand %p73, %p74
      %p76 = pneg %p75
      // Predicated region
      $region9: #{tpu_custom_call.1} parent=5 // pred_check
        _
      $region10: #{tpu_custom_call.1} parent=5 // pred_check_branch
        %78 = sbr.rel (%p75) target = $region12
      $region11: #{tpu_custom_call.1} parent=5 // pred_region
        %s79 = ssub.s32 %s13, 1
      $region12: #{tpu_custom_call.1} parent=5 // pred_fallthru
        _
      %p80 = scmp.lt.s32.totalorder %s13, 2
      // Predicated region
      $region13: #{tpu_custom_call.1} parent=5 // pred_check
        %p81 = pneg %p80
      $region14: #{tpu_custom_call.1} parent=5 // pred_check_branch
        %83 = sbr.rel (%p81) target = $region16
      $region15: #{tpu_custom_call.1} parent=5 // pred_region
        // Predicated region
        $region17: #{tpu_custom_call.1} parent=15 // pred_check
          %p84 = pneg %p33
        $region18: #{tpu_custom_call.1} parent=15 // pred_check_branch
          %86 = sbr.rel (%p84) target = $region20
        $region19: #{tpu_custom_call.1} parent=15 // pred_region
          %s87 = sand.u32 %s23, 1
          %s88 = scalar_lea.sflag [#allocation3], %s87
          %s89 = sand.u32 %s23, 1
          %s90 = smul.addr %s89, 512
          %s91 = scalar_lea.vmem [#allocation2], %s90
          %s92 = smul.u32 64, %s13
          %s94 = ssub.s32 8192, 8192
          %95 = vsyncadd %s88, %s94
          %s96 = smul.addr %s92, 128
          %s97 = scalar_lea.hbm %s0, %s96
          %s98 = sshll.u32 %s91, 4
          %s99 = int_to_ptr.vmem [resolvable:$true] %s98
          %104 = dma.hbm_to_vmem [thread:$0]  %s97, 8192, %s99, %s88, 128, 128, 8
        $region20: #{tpu_custom_call.1} parent=15 // pred_fallthru
          _
      $region16: #{tpu_custom_call.1} parent=5 // pred_fallthru
        _
      %p105 = scmp.le.s32.totalorder 1, %s13
      %p106 = scmp.lt.s32.totalorder %s13, 3
      %p107 = pnand %p105, %p106
      %p108 = pneg %p107
      // Predicated region
      $region21: #{tpu_custom_call.1} parent=5 // pred_check
        _
      $region22: #{tpu_custom_call.1} parent=5 // pred_check_branch
        %110 = sbr.rel (%p107) target = $region24
      $region23: #{tpu_custom_call.1} parent=5 // pred_region
        %s111 = ssub.s32 %s13, 1
        %s112 = sand.u32 %s26, 1
        %s113 = scalar_lea.sflag [#allocation3], %s112
        %s114 = sand.u32 %s26, 1
        %s115 = smul.addr %s114, 512
        %s116 = scalar_lea.vmem [#allocation2], %s115
        // Predicated region
        $region25: #{tpu_custom_call.1} parent=23 // pred_check
          %p117 = pneg %p39
        $region26: #{tpu_custom_call.1} parent=23 // pred_check_branch
          %119 = sbr.rel (%p117) target = $region28
        $region27: #{tpu_custom_call.1} parent=23 // pred_region
          %120 = dma.done %s113, 8192
        $region28: #{tpu_custom_call.1} parent=23 // pred_fallthru
          _
        %s121 = sand.u32 %s26, 1
        %s122 = scalar_lea.sflag [#allocation3], %s121
        %s123 = sand.u32 %s26, 1
        %s124 = smul.addr %s123, 512
        %s125 = scalar_lea.vmem [#allocation2], %s124
        %p126 = pneg %p39
        %p127 = pneg %p36
        %p128 = pneg %p65
        %p129 = pneg %p62
        %s130 = sand.u32 %s52, 1
        %s131 = scalar_lea.sflag [#allocation4], %s130
        %s132 = sand.u32 %s52, 1
        %s133 = smul.addr %s132, 512
        %s134 = scalar_lea.vmem [#allocation5], %s133
        %s135 = smul.u32 64, %s18
        %s136 = smul.u32 64, %s18
        %v137 = vld [vmem:[%s116] sm:$0xff]
        %v138 = vld [vmem:[%s116 + $0x8] sm:$0xff]
        %v139 = vld [vmem:[%s116 + $0x10] sm:$0xff]
        %v140 = vld [vmem:[%s116 + $0x18] sm:$0xff]
        %v141 = vld [vmem:[%s116 + $0x20] sm:$0xff]
        %v142 = vld [vmem:[%s116 + $0x28] sm:$0xff]
        %v143 = vld [vmem:[%s116 + $0x30] sm:$0xff]
        %v144 = vld [vmem:[%s116 + $0x38] sm:$0xff]
        %v145 = vld [vmem:[%s116 + $0x40] sm:$0xff]
        %v146 = vld [vmem:[%s116 + $0x48] sm:$0xff]
        %v147 = vld [vmem:[%s116 + $0x50] sm:$0xff]
        %v148 = vld [vmem:[%s116 + $0x58] sm:$0xff]
        %v149 = vld [vmem:[%s116 + $0x60] sm:$0xff]
        %v150 = vld [vmem:[%s116 + $0x68] sm:$0xff]
        %v151 = vld [vmem:[%s116 + $0x70] sm:$0xff]
        %v152 = vld [vmem:[%s116 + $0x78] sm:$0xff]
        %v153 = vld [vmem:[%s116 + $0x80] sm:$0xff]
        %v154 = vld [vmem:[%s116 + $0x88] sm:$0xff]
        %v155 = vld [vmem:[%s116 + $0x90] sm:$0xff]
        %v156 = vld [vmem:[%s116 + $0x98] sm:$0xff]
        %v157 = vld [vmem:[%s116 + $0xa0] sm:$0xff]
        %v158 = vld [vmem:[%s116 + $0xa8] sm:$0xff]
        %v159 = vld [vmem:[%s116 + $0xb0] sm:$0xff]
        %v160 = vld [vmem:[%s116 + $0xb8] sm:$0xff]
        %v161 = vld [vmem:[%s116 + $0xc0] sm:$0xff]
        %v162 = vld [vmem:[%s116 + $0xc8] sm:$0xff]
        %v163 = vld [vmem:[%s116 + $0xd0] sm:$0xff]
        %v164 = vld [vmem:[%s116 + $0xd8] sm:$0xff]
        %v165 = vld [vmem:[%s116 + $0xe0] sm:$0xff]
        %v166 = vld [vmem:[%s116 + $0xe8] sm:$0xff]
        %v167 = vld [vmem:[%s116 + $0xf0] sm:$0xff]
        %v168 = vld [vmem:[%s116 + $0xf8] sm:$0xff]
        %v169 = vld [vmem:[%s116 + $0x100] sm:$0xff]
        %v170 = vld [vmem:[%s116 + $0x108] sm:$0xff]
        %v171 = vld [vmem:[%s116 + $0x110] sm:$0xff]
        %v172 = vld [vmem:[%s116 + $0x118] sm:$0xff]
        %v173 = vld [vmem:[%s116 + $0x120] sm:$0xff]
        %v174 = vld [vmem:[%s116 + $0x128] sm:$0xff]
        %v175 = vld [vmem:[%s116 + $0x130] sm:$0xff]
        %v176 = vld [vmem:[%s116 + $0x138] sm:$0xff]
        %v177 = vld [vmem:[%s116 + $0x140] sm:$0xff]
        %v178 = vld [vmem:[%s116 + $0x148] sm:$0xff]
        %v179 = vld [vmem:[%s116 + $0x150] sm:$0xff]
        %v180 = vld [vmem:[%s116 + $0x158] sm:$0xff]
        %v181 = vld [vmem:[%s116 + $0x160] sm:$0xff]
        %v182 = vld [vmem:[%s116 + $0x168] sm:$0xff]
        %v183 = vld [vmem:[%s116 + $0x170] sm:$0xff]
        %v184 = vld [vmem:[%s116 + $0x178] sm:$0xff]
        %v185 = vld [vmem:[%s116 + $0x180] sm:$0xff]
        %v186 = vld [vmem:[%s116 + $0x188] sm:$0xff]
        %v187 = vld [vmem:[%s116 + $0x190] sm:$0xff]
        %v188 = vld [vmem:[%s116 + $0x198] sm:$0xff]
        %v189 = vld [vmem:[%s116 + $0x1a0] sm:$0xff]
        %v190 = vld [vmem:[%s116 + $0x1a8] sm:$0xff]
        %v191 = vld [vmem:[%s116 + $0x1b0] sm:$0xff]
        %v192 = vld [vmem:[%s116 + $0x1b8] sm:$0xff]
        %v193 = vld [vmem:[%s116 + $0x1c0] sm:$0xff]
        %v194 = vld [vmem:[%s116 + $0x1c8] sm:$0xff]
        %v195 = vld [vmem:[%s116 + $0x1d0] sm:$0xff]
        %v196 = vld [vmem:[%s116 + $0x1d8] sm:$0xff]
        %v197 = vld [vmem:[%s116 + $0x1e0] sm:$0xff]
        %v198 = vld [vmem:[%s116 + $0x1e8] sm:$0xff]
        %v199 = vld [vmem:[%s116 + $0x1f0] sm:$0xff]
        %v200 = vld [vmem:[%s116 + $0x1f8] sm:$0xff]
        %v201 = vmax.f32 %v137, 0.0
        %v202 = vmax.f32 %v138, 0.0
        %v203 = vmax.f32 %v139, 0.0
        %v204 = vmax.f32 %v140, 0.0
        %v205 = vmax.f32 %v141, 0.0
        %v206 = vmax.f32 %v142, 0.0
        %v207 = vmax.f32 %v143, 0.0
        %v208 = vmax.f32 %v144, 0.0
        %v209 = vmax.f32 %v145, 0.0
        %v210 = vmax.f32 %v146, 0.0
        %v211 = vmax.f32 %v147, 0.0
        %v212 = vmax.f32 %v148, 0.0
        %v213 = vmax.f32 %v149, 0.0
        %v214 = vmax.f32 %v150, 0.0
        %v215 = vmax.f32 %v151, 0.0
        %v216 = vmax.f32 %v152, 0.0
        %v217 = vmax.f32 %v153, 0.0
        %v218 = vmax.f32 %v154, 0.0
        %v219 = vmax.f32 %v155, 0.0
        %v220 = vmax.f32 %v156, 0.0
        %v221 = vmax.f32 %v157, 0.0
        %v222 = vmax.f32 %v158, 0.0
        %v223 = vmax.f32 %v159, 0.0
        %v224 = vmax.f32 %v160, 0.0
        %v225 = vmax.f32 %v161, 0.0
        %v226 = vmax.f32 %v162, 0.0
        %v227 = vmax.f32 %v163, 0.0
        %v228 = vmax.f32 %v164, 0.0
        %v229 = vmax.f32 %v165, 0.0
        %v230 = vmax.f32 %v166, 0.0
        %v231 = vmax.f32 %v167, 0.0
        %v232 = vmax.f32 %v168, 0.0
        %v233 = vmax.f32 %v169, 0.0
        %v234 = vmax.f32 %v170, 0.0
        %v235 = vmax.f32 %v171, 0.0
        %v236 = vmax.f32 %v172, 0.0
        %v237 = vmax.f32 %v173, 0.0
        %v238 = vmax.f32 %v174, 0.0
        %v239 = vmax.f32 %v175, 0.0
        %v240 = vmax.f32 %v176, 0.0
        %v241 = vmax.f32 %v177, 0.0
        %v242 = vmax.f32 %v178, 0.0
        %v243 = vmax.f32 %v179, 0.0
        %v244 = vmax.f32 %v180, 0.0
        %v245 = vmax.f32 %v181, 0.0
        %v246 = vmax.f32 %v182, 0.0
        %v247 = vmax.f32 %v183, 0.0
        %v248 = vmax.f32 %v184, 0.0
        %v249 = vmax.f32 %v185, 0.0
        %v250 = vmax.f32 %v186, 0.0
        %v251 = vmax.f32 %v187, 0.0
        %v252 = vmax.f32 %v188, 0.0
        %v253 = vmax.f32 %v189, 0.0
        %v254 = vmax.f32 %v190, 0.0
        %v255 = vmax.f32 %v191, 0.0
        %v256 = vmax.f32 %v192, 0.0
        %v257 = vmax.f32 %v193, 0.0
        %v258 = vmax.f32 %v194, 0.0
        %v259 = vmax.f32 %v195, 0.0
        %v260 = vmax.f32 %v196, 0.0
        %v261 = vmax.f32 %v197, 0.0
        %v262 = vmax.f32 %v198, 0.0
        %v263 = vmax.f32 %v199, 0.0
        %v264 = vmax.f32 %v200, 0.0
        %265 = vst [vmem:[%s134] sm:$0xff] %v201
        %266 = vst [vmem:[%s134 + $0x8] sm:$0xff] %v202
        %267 = vst [vmem:[%s134 + $0x10] sm:$0xff] %v203
        %268 = vst [vmem:[%s134 + $0x18] sm:$0xff] %v204
        %269 = vst [vmem:[%s134 + $0x20] sm:$0xff] %v205
        %270 = vst [vmem:[%s134 + $0x28] sm:$0xff] %v206
        %271 = vst [vmem:[%s134 + $0x30] sm:$0xff] %v207
        %272 = vst [vmem:[%s134 + $0x38] sm:$0xff] %v208
        %273 = vst [vmem:[%s134 + $0x40] sm:$0xff] %v209
        %274 = vst [vmem:[%s134 + $0x48] sm:$0xff] %v210
        %275 = vst [vmem:[%s134 + $0x50] sm:$0xff] %v211
        %276 = vst [vmem:[%s134 + $0x58] sm:$0xff] %v212
        %277 = vst [vmem:[%s134 + $0x60] sm:$0xff] %v213
        %278 = vst [vmem:[%s134 + $0x68] sm:$0xff] %v214
        %279 = vst [vmem:[%s134 + $0x70] sm:$0xff] %v215
        %280 = vst [vmem:[%s134 + $0x78] sm:$0xff] %v216
        %281 = vst [vmem:[%s134 + $0x80] sm:$0xff] %v217
        %282 = vst [vmem:[%s134 + $0x88] sm:$0xff] %v218
        %283 = vst [vmem:[%s134 + $0x90] sm:$0xff] %v219
        %284 = vst [vmem:[%s134 + $0x98] sm:$0xff] %v220
        %285 = vst [vmem:[%s134 + $0xa0] sm:$0xff] %v221
        %286 = vst [vmem:[%s134 + $0xa8] sm:$0xff] %v222
        %287 = vst [vmem:[%s134 + $0xb0] sm:$0xff] %v223
        %288 = vst [vmem:[%s134 + $0xb8] sm:$0xff] %v224
        %289 = vst [vmem:[%s134 + $0xc0] sm:$0xff] %v225
        %290 = vst [vmem:[%s134 + $0xc8] sm:$0xff] %v226
        %291 = vst [vmem:[%s134 + $0xd0] sm:$0xff] %v227
        %292 = vst [vmem:[%s134 + $0xd8] sm:$0xff] %v228
        %293 = vst [vmem:[%s134 + $0xe0] sm:$0xff] %v229
        %294 = vst [vmem:[%s134 + $0xe8] sm:$0xff] %v230
        %295 = vst [vmem:[%s134 + $0xf0] sm:$0xff] %v231
        %296 = vst [vmem:[%s134 + $0xf8] sm:$0xff] %v232
        %297 = vst [vmem:[%s134 + $0x100] sm:$0xff] %v233
        %298 = vst [vmem:[%s134 + $0x108] sm:$0xff] %v234
        %299 = vst [vmem:[%s134 + $0x110] sm:$0xff] %v235
        %300 = vst [vmem:[%s134 + $0x118] sm:$0xff] %v236
        %301 = vst [vmem:[%s134 + $0x120] sm:$0xff] %v237
        %302 = vst [vmem:[%s134 + $0x128] sm:$0xff] %v238
        %303 = vst [vmem:[%s134 + $0x130] sm:$0xff] %v239
        %304 = vst [vmem:[%s134 + $0x138] sm:$0xff] %v240
        %305 = vst [vmem:[%s134 + $0x140] sm:$0xff] %v241
        %306 = vst [vmem:[%s134 + $0x148] sm:$0xff] %v242
        %307 = vst [vmem:[%s134 + $0x150] sm:$0xff] %v243
        %308 = vst [vmem:[%s134 + $0x158] sm:$0xff] %v244
        %309 = vst [vmem:[%s134 + $0x160] sm:$0xff] %v245
        %310 = vst [vmem:[%s134 + $0x168] sm:$0xff] %v246
        %311 = vst [vmem:[%s134 + $0x170] sm:$0xff] %v247
        %312 = vst [vmem:[%s134 + $0x178] sm:$0xff] %v248
        %313 = vst [vmem:[%s134 + $0x180] sm:$0xff] %v249
        %314 = vst [vmem:[%s134 + $0x188] sm:$0xff] %v250
        %315 = vst [vmem:[%s134 + $0x190] sm:$0xff] %v251
        %316 = vst [vmem:[%s134 + $0x198] sm:$0xff] %v252
        %317 = vst [vmem:[%s134 + $0x1a0] sm:$0xff] %v253
        %318 = vst [vmem:[%s134 + $0x1a8] sm:$0xff] %v254
        %319 = vst [vmem:[%s134 + $0x1b0] sm:$0xff] %v255
        %320 = vst [vmem:[%s134 + $0x1b8] sm:$0xff] %v256
        %321 = vst [vmem:[%s134 + $0x1c0] sm:$0xff] %v257
        %322 = vst [vmem:[%s134 + $0x1c8] sm:$0xff] %v258
        %323 = vst [vmem:[%s134 + $0x1d0] sm:$0xff] %v259
        %324 = vst [vmem:[%s134 + $0x1d8] sm:$0xff] %v260
        %325 = vst [vmem:[%s134 + $0x1e0] sm:$0xff] %v261
        %326 = vst [vmem:[%s134 + $0x1e8] sm:$0xff] %v262
        %327 = vst [vmem:[%s134 + $0x1f0] sm:$0xff] %v263
        %328 = vst [vmem:[%s134 + $0x1f8] sm:$0xff] %v264
        %s329 = sand.u32 %s52, 1
        %s330 = scalar_lea.sflag [#allocation4], %s329
        %s331 = sand.u32 %s52, 1
        %s332 = smul.addr %s331, 512
        %s333 = scalar_lea.vmem [#allocation5], %s332
        // Predicated region
        $region29: #{tpu_custom_call.1} parent=23 // pred_check
          %p334 = pneg %p62
        $region30: #{tpu_custom_call.1} parent=23 // pred_check_branch
          %336 = sbr.rel (%p334) target = $region32
        $region31: #{tpu_custom_call.1} parent=23 // pred_region
          %s337 = smul.u32 64, %s18
          %s339 = ssub.s32 8192, 8192
          %340 = vsyncadd %s330, %s339
          %s341 = smul.addr %s337, 128
          %s342 = scalar_lea.hbm %s1, %s341
          %s343 = sshll.u32 %s333, 4
          %s344 = int_to_ptr.vmem [resolvable:$true] %s343
          %349 = dma.vmem_to_hbm [thread:$0]  %s344, 8192, %s342, %s330, 128, 128, 8
        $region32: #{tpu_custom_call.1} parent=23 // pred_fallthru
          _
      $region24: #{tpu_custom_call.1} parent=5 // pred_fallthru
        _
      %p350 = scmp.le.s32.totalorder 2, %s13
      // Predicated region
      $region33: #{tpu_custom_call.1} parent=5 // pred_check
        %p351 = pneg %p350
      $region34: #{tpu_custom_call.1} parent=5 // pred_check_branch
        %353 = sbr.rel (%p351) target = $region36
      $region35: #{tpu_custom_call.1} parent=5 // pred_region
        %s354 = ssub.s32 %s13, 2
        // Predicated region
        $region37: #{tpu_custom_call.1} parent=35 // pred_check
          %p355 = pneg %p68
        $region38: #{tpu_custom_call.1} parent=35 // pred_check_branch
          %357 = sbr.rel (%p355) target = $region40
        $region39: #{tpu_custom_call.1} parent=35 // pred_region
          %s358 = sand.u32 %s53, 1
          %s359 = scalar_lea.sflag [#allocation4], %s358
          %s360 = sand.u32 %s53, 1
          %s361 = smul.addr %s360, 512
          %s362 = scalar_lea.vmem [#allocation5], %s361
          %363 = dma.done %s359, 8192
        $region40: #{tpu_custom_call.1} parent=35 // pred_fallthru
          _
      $region36: #{tpu_custom_call.1} parent=5 // pred_fallthru
        _
    $region6: #{tpu_custom_call.1} parent=1 // loop_footer
      %s17 = sadd.s32 1, %s13
    $region7: #{tpu_custom_call.1} parent=1 // loop_footer_branch
      %12 = sbr.rel target = $region3
    $region8: #{tpu_custom_call.1} parent=1 // loop_exit
      _
    %364 = vsyncpa [#allocation3], 1
    %s365 = scalar_lea.sflag [#allocation3], 1
    %366 = vsyncpa %s365, 1
    %367 = vsyncpa [#allocation4], 1
    %s368 = scalar_lea.sflag [#allocation4], 1
    %369 = vsyncpa %s368, 1

</llo_original>
